<compile_context>
chip_gen: v7x
topology: tpu7x:2x2x1
jax: 0.10.0
libtpu: 0.0.40
codegen_flags: <defaults>
</compile_context>

<pallas_src>
import functools

import numpy as np
import jax
import jax.numpy as jnp
from jax.experimental import pallas as pl
from jax.experimental.pallas import tpu as pltpu

_MIN_PALLAS_BYTES = 128 * 1024          # below this a plain fused XLA add is strictly faster
_TARGET_BLOCK_BYTES = 2 * 1024 * 1024   # ~2 MiB x-blocks: ~85%+ of HBM roofline per measured data
_VMEM_LIMIT_BYTES = 32 * 1024 * 1024    # explicit budget; safe on v5e/v6e (128 MiB) and v7x (64 MiB)


def _build_pe_table(max_len: int, d_model: int) -> np.ndarray:
    """Sinusoidal PE table, identical math to the torch __init__ (f32, shape (max_len, d_model))."""
    assert d_model % 2 == 0, "d_model must be even (same implicit constraint as the torch module)"
    position = np.arange(0, max_len, dtype=np.float32)[:, None]
    div_term = np.exp(np.arange(0, d_model, 2, dtype=np.float32) * (-np.log(10000.0) / d_model))
    pe = np.zeros((max_len, d_model), dtype=np.float32)
    pe[:, 0::2] = np.sin(position * div_term)
    pe[:, 1::2] = np.cos(position * div_term)
    return pe


def _pe_add_kernel(x_ref, pe_ref, o_ref):
    # pe block has a size-1 axis where x has batch -> implicit broadcast add.
    # Promotion (e.g. bf16 + f32) and the final cast happen in-register under the DMA.
    o_ref[...] = (x_ref[...] + pe_ref[...]).astype(o_ref.dtype)


def _choose_tile_s(seq_len: int, bytes_per_row: int, itemsize: int) -> int:
    """Sequence rows per block: ~2 MiB blocks, prefer >=2 grid steps, sublane-packing aligned."""
    sublane = {4: 8, 2: 16, 1: 32}.get(itemsize, 8)
    tile = max(1, _TARGET_BLOCK_BYTES // max(1, bytes_per_row))
    tile = min(tile, max(1, pl.cdiv(seq_len, 2)))      # >=2 grid steps -> DMA/compute overlap
    tile = max(sublane, (tile // sublane) * sublane)   # multiple of sublane packing (8/16/32)
    return int(tile)


@functools.partial(jax.jit, static_argnames=("batch_first", "force_pallas"))
def positional_encoding_forward(x, pe, *, batch_first=False, force_pallas=False):
    """x: (S,B,D) if batch_first=False (pe: (max_len,1,D)); else (B,S,D) (pe: (1,max_len,D))."""
    if batch_first:
        B, S, D = x.shape
    else:
        S, B, D = x.shape
    out_dtype = jnp.result_type(x.dtype, pe.dtype)     # matches torch promotion (pe buffer is f32)

    if not force_pallas and x.size * x.dtype.itemsize < _MIN_PALLAS_BYTES:
        # Tiny input: pallas_call launch + per-step overhead dwarfs a few-KB elementwise add.
        add = x + (pe[:, :S, :] if batch_first else pe[:S])
        return add.astype(out_dtype)

    tile_s = _choose_tile_s(S, B * D * x.dtype.itemsize, x.dtype.itemsize)
    grid = (pl.cdiv(S, tile_s),)

    if batch_first:
        # x (B, S, D): lane axis = D (full), sublane axis = tiled S (multiple of 8/16/32).
        # pe (1, max_len, D) broadcasts over the leading B inside the kernel.
        x_spec = pl.BlockSpec((B, tile_s, D), lambda i: (0, i, 0))
        pe_spec = pl.BlockSpec((1, tile_s, D), lambda i: (0, i, 0))
        out_shape = jax.ShapeDtypeStruct((B, S, D), out_dtype)
    else:
        # x (S, B, D): lane axis = D (full), sublane axis = B (full) -> (8,128) rule satisfied
        # regardless of B/D; the tiled axis is the leading dim. pe broadcasts over batch sublanes.
        x_spec = pl.BlockSpec((tile_s, B, D), lambda i: (i, 0, 0))
        pe_spec = pl.BlockSpec((tile_s, 1, D), lambda i: (i, 0, 0))
        out_shape = jax.ShapeDtypeStruct((S, B, D), out_dtype)

    return pl.pallas_call(
        _pe_add_kernel,
        out_shape=out_shape,
        grid=grid,
        in_specs=[x_spec, pe_spec],
        out_specs=x_spec,
        compiler_params=pltpu.CompilerParams(
            dimension_semantics=("parallel",),          # v7x: shard sequence tiles across both TCs
            vmem_limit_bytes=_VMEM_LIMIT_BYTES,
        ),
    )(x, pe)


class PositionalEncoding:
    """Drop-in (eval-mode) equivalent of the torch PositionalEncoding module."""

    def __init__(self, d_model, dropout=0.1, max_len=5000, batch_first=False):
        self.batch_first = batch_first
        self.dropout_p = dropout  # eval-mode identity; see TODO at top of file.
        pe2d = _build_pe_table(max_len, d_model)                     # (max_len, D) f32
        if batch_first:
            self.pe = jnp.asarray(pe2d[None, :, :])                  # (1, max_len, D)
        else:
            self.pe = jnp.asarray(pe2d[:, None, :])                  # (max_len, 1, D)

    def __call__(self, x, force_pallas=False):
        return positional_encoding_forward(
            x, self.pe, batch_first=self.batch_first, force_pallas=force_pallas)


if __name__ == "__main__":
    key = jax.random.PRNGKey(0)
    k1, k2, k3 = jax.random.split(key, 3)

    # Small, fast shapes (the kernel itself scales to arbitrary S/B/D via the grid).
    d_model, max_len = 32, 64
    seq, batch = 16, 2

    # --- seq-first (batch_first=False), f32, Pallas path (2 grid steps, partial-free) ---
    mod = PositionalEncoding(d_model, max_len=max_len, batch_first=False)
    x = jax.random.normal(k1, (seq, batch, d_model), dtype=jnp.float32)
    out = jax.block_until_ready(mod(x, force_pallas=True))
    ref = x + mod.pe[:seq]
    assert out.shape == (seq, batch, d_model) and out.dtype == jnp.float32
    np.testing.assert_allclose(np.asarray(out), np.asarray(ref), rtol=1e-6, atol=1e-6)

    # --- batch-first, f32, Pallas path with no wrapper transposes ---
    mod_bf = PositionalEncoding(d_model, max_len=max_len, batch_first=True)
    xb = jax.random.normal(k2, (batch, seq, d_model), dtype=jnp.float32)
    out_bf = jax.block_until_ready(mod_bf(xb, force_pallas=True))
    ref_bf = xb + mod_bf.pe[:, :seq, :]
    assert out_bf.shape == (batch, seq, d_model)
    np.testing.assert_allclose(np.asarray(out_bf), np.asarray(ref_bf), rtol=1e-6, atol=1e-6)

    # --- bf16 input: result promotes to f32 exactly like torch (bf16 x + f32 pe buffer) ---
    x16 = x.astype(jnp.bfloat16)
    out16 = jax.block_until_ready(mod(x16, force_pallas=True))
    assert out16.dtype == jnp.float32
    ref16 = x16 + mod.pe[:seq]
    np.testing.assert_allclose(np.asarray(out16), np.asarray(ref16), rtol=1e-6, atol=1e-6)

    # --- tiny input: size guard routes to a plain fused XLA add (no Pallas launch overhead) ---
    xs = jax.random.normal(k3, (8, 2, d_model), dtype=jnp.float32)
    outs = jax.block_until_ready(mod(xs))
    refs = xs + mod.pe[:8]
    np.testing.assert_allclose(np.asarray(outs), np.asarray(refs), rtol=1e-6, atol=1e-6)

    print("KERNEL_OK")
</pallas_src>

<mosaic_0001>
module attributes {stable_mosaic.version = 11 : i64} {
  func.func @_pe_add_kernel(%arg0: i32, %arg1: memref<8x2x32xf32, #tpu.memory_space<vmem>>, %arg2: memref<8x1x32xf32, #tpu.memory_space<vmem>>, %arg3: memref<8x2x32xf32, #tpu.memory_space<vmem>>) attributes {dimension_semantics = [#tpu.dimension_semantics<parallel>], iteration_bounds = array<i64: 2>, scalar_prefetch = 0 : i64, scratch_operands = 0 : i64, tpu.core_type = #tpu.core_type<tc>, window_params = [{transform_indices = @transform_0, window_bounds = array<i64: 8, 2, 32>}, {transform_indices = @transform_1, window_bounds = array<i64: 8, 1, 32>}, {transform_indices = @transform_2, window_bounds = array<i64: 8, 2, 32>}]} {
    %c0 = arith.constant 0 : index
    %c0_0 = arith.constant 0 : index
    %c0_1 = arith.constant 0 : index
    %0 = vector.load %arg1[%c0, %c0_0, %c0_1] : memref<8x2x32xf32, #tpu.memory_space<vmem>>, vector<8x2x32xf32>
    %c0_2 = arith.constant 0 : index
    %c0_3 = arith.constant 0 : index
    %c0_4 = arith.constant 0 : index
    %1 = vector.load %arg2[%c0_2, %c0_3, %c0_4] : memref<8x1x32xf32, #tpu.memory_space<vmem>>, vector<8x1x32xf32>
    %2 = vector.broadcast %1 : vector<8x1x32xf32> to vector<8x2x32xf32>
    %3 = arith.addf %0, %2 : vector<8x2x32xf32>
    %c0_5 = arith.constant 0 : index
    %c0_6 = arith.constant 0 : index
    %c0_7 = arith.constant 0 : index
    %4 = vector.load %arg3[%c0_5, %c0_6, %c0_7] : memref<8x2x32xf32, #tpu.memory_space<vmem>>, vector<8x2x32xf32>
    tpu.vector_store %arg3[%c0_5, %c0_6, %c0_7], %3 {strides = array<i32>} : memref<8x2x32xf32, #tpu.memory_space<vmem>>, vector<8x2x32xf32>,
    return
  }
  func.func @transform_0(%arg0: i32) -> (i32, i32, i32) {
    %c0_i32 = arith.constant 0 : i32
    %c0_i32_0 = arith.constant 0 : i32
    %c0_i32_1 = arith.constant 0 : i32
    return %arg0, %c0_i32, %c0_i32_0 : i32, i32, i32
  }
  func.func @transform_1(%arg0: i32) -> (i32, i32, i32) {
    %c0_i32 = arith.constant 0 : i32
    %c0_i32_0 = arith.constant 0 : i32
    %c0_i32_1 = arith.constant 0 : i32
    return %arg0, %c0_i32, %c0_i32_0 : i32, i32, i32
  }
  func.func @transform_2(%arg0: i32) -> (i32, i32, i32) {
    %c0_i32 = arith.constant 0 : i32
    %c0_i32_0 = arith.constant 0 : i32
    %c0_i32_1 = arith.constant 0 : i32
    return %arg0, %c0_i32, %c0_i32_0 : i32, i32, i32
  }
}

</mosaic_0001>

<llo_original>
// kernel: positional_encoding_forward.1
$region0: #{positional_encoding_forward.1}
  #allocation0 [shape = 'u32[]', space=smem, size = 0x4, offset = 0x4, fixed_abs, tag = 'smem constant byte address 0x4 - core index']
  #allocation1 [shape = 'u32[144,128]{1,0:T(1,128)}', space=vmem, size = 0x12000, scoped, tag = 'internal scratch']
  %s0 = inlined_call_operand.vmem [shape: f32[16,2,32], index: 0, kind: input, shape index: {}]
  %s1 = inlined_call_operand.vmem [shape: f32[64,1,32], index: 1, kind: input, shape index: {}]
  %s2 = inlined_call_operand.hbm [shape: f32[16,2,32], index: 2, kind: output, shape index: {}]
  %s3 = sld [smem:[#allocation0]]
  $region41: #{positional_encoding_forward.1} parent=0
    _
  %s5 = ssub.s32 1, %s3
  %s6 = scalar_select 0, %s5, %s3
  $region1: #{positional_encoding_forward.1} parent=0
    #allocation2 [shape = 'u8[16384]{0}', space=vmem, size = 0x4000, scoped, tag = 'output window, operand 0']
    #allocation3 [shape = 's32[2]{0}', space=sflag, size = 0x8, scoped, tag = 'scoped memory for positional_encoding_forward.1']
    %7 = vsyncpa [#allocation3], 0
    %s8 = scalar_lea.sflag [#allocation3], 1
    %9 = vsyncpa %s8, 0
    loop: start=0, step=1, limit=4
    $region2: #{positional_encoding_forward.1} parent=1 // loop_pre_header
      _
    $region3: #{positional_encoding_forward.1} parent=1 // loop_header
      %s11 = sphi 0, %s15
      %p12 = scmp.ge.s32.totalorder %s11, 4
      %s21 = sphi 0, %s23
      %s24 = sphi 0, %s21
      %s25 = sphi 0, %s24
      %s41 = sphi 0, %s25
      %s47 = sphi 0, %s49
      %s50 = sphi 0, %s47
      %s51 = sphi 0, %s50
      %s67 = sphi 0, %s51
      %s73 = sphi 0, %s75
      %s76 = sphi 0, %s73
      %s77 = sphi 0, %s76
      %s93 = sphi 0, %s77
    $region4: #{positional_encoding_forward.1} parent=1 // loop_header_branch
      %14 = sbr.rel (%p12) target = $region8
    $region5: #{positional_encoding_forward.1} parent=1 // loop_body
      %s16 = ssub.s32 %s11, 1
      %s17 = ssub.s32 %s11, 2
      %s18 = sadd.s32 %s11, 1
      %s19 = ssub.s32 %s11, %s18
      %p20 = scmp.eq.s32.totalorder %s19, 0
      %s22 = sadd.s32 %s21, 1
      %s23 = scalar_select %p20, %s21, %s22
      %p26 = pneg %p20
      %p27 = scmp.eq.s32.totalorder %s11, 1
      %p28 = por %p26, %p27
      %p29 = scmp.ne.s32.totalorder %s21, %s24
      %p30 = scmp.eq.s32.totalorder %s11, 0
      %p31 = por %p29, %p30
      %p32 = scmp.ne.s32.totalorder %s21, %s24
      %p33 = scmp.eq.s32.totalorder %s16, 1
      %p34 = por %p32, %p33
      %p35 = scmp.ne.s32.totalorder %s24, %s25
      %p36 = scmp.eq.s32.totalorder %s16, 0
      %p37 = por %p35, %p36
      %p38 = scmp.ne.s32.totalorder %s24, %s25
      %p39 = scmp.eq.s32.totalorder %s17, 1
      %p40 = por %p38, %p39
      %p42 = scmp.ne.s32.totalorder %s25, %s41
      %p43 = scmp.eq.s32.totalorder %s17, 0
      %p44 = por %p42, %p43
      %s45 = ssub.s32 %s11, %s18
      %p46 = scmp.eq.s32.totalorder %s45, 0
      %s48 = sadd.s32 %s47, 1
      %s49 = scalar_select %p46, %s47, %s48
      %p52 = pneg %p46
      %p53 = scmp.eq.s32.totalorder %s11, 1
      %p54 = por %p52, %p53
      %p55 = scmp.ne.s32.totalorder %s47, %s50
      %p56 = scmp.eq.s32.totalorder %s11, 0
      %p57 = por %p55, %p56
      %p58 = scmp.ne.s32.totalorder %s47, %s50
      %p59 = scmp.eq.s32.totalorder %s16, 1
      %p60 = por %p58, %p59
      %p61 = scmp.ne.s32.totalorder %s50, %s51
      %p62 = scmp.eq.s32.totalorder %s16, 0
      %p63 = por %p61, %p62
      %p64 = scmp.ne.s32.totalorder %s50, %s51
      %p65 = scmp.eq.s32.totalorder %s17, 1
      %p66 = por %p64, %p65
      %p68 = scmp.ne.s32.totalorder %s51, %s67
      %p69 = scmp.eq.s32.totalorder %s17, 0
      %p70 = por %p68, %p69
      %s71 = ssub.s32 %s11, %s18
      %p72 = scmp.eq.s32.totalorder %s71, 0
      %s74 = sadd.s32 %s73, 1
      %s75 = scalar_select %p72, %s73, %s74
      %p78 = pneg %p72
      %p79 = scmp.eq.s32.totalorder %s11, 1
      %p80 = por %p78, %p79
      %p81 = scmp.ne.s32.totalorder %s73, %s76
      %p82 = scmp.eq.s32.totalorder %s11, 0
      %p83 = por %p81, %p82
      %p84 = scmp.ne.s32.totalorder %s73, %s76
      %p85 = scmp.eq.s32.totalorder %s16, 1
      %p86 = por %p84, %p85
      %p87 = scmp.ne.s32.totalorder %s76, %s77
      %p88 = scmp.eq.s32.totalorder %s16, 0
      %p89 = por %p87, %p88
      %p90 = scmp.ne.s32.totalorder %s76, %s77
      %p91 = scmp.eq.s32.totalorder %s17, 1
      %p92 = por %p90, %p91
      %p94 = scmp.ne.s32.totalorder %s77, %s93
      %p95 = scmp.eq.s32.totalorder %s17, 0
      %p96 = por %p94, %p95
      %p97 = scmp.le.s32.totalorder 1, %s11
      %p98 = scmp.lt.s32.totalorder %s11, 3
      %p99 = pnand %p97, %p98
      %p100 = pneg %p99
      // Predicated region
      $region9: #{positional_encoding_forward.1} parent=5 // pred_check
        _
      $region10: #{positional_encoding_forward.1} parent=5 // pred_check_branch
        %102 = sbr.rel (%p99) target = $region12
      $region11: #{positional_encoding_forward.1} parent=5 // pred_region
        %s103 = ssub.s32 %s11, 1
      $region12: #{positional_encoding_forward.1} parent=5 // pred_fallthru
        _
      %p104 = scmp.lt.s32.totalorder %s11, 2
      // Predicated region
      $region13: #{positional_encoding_forward.1} parent=5 // pred_check
        %p105 = pneg %p104
      $region14: #{positional_encoding_forward.1} parent=5 // pred_check_branch
        %107 = sbr.rel (%p105) target = $region16
      $region15: #{positional_encoding_forward.1} parent=5 // pred_region
        // Predicated region
        $region17: #{positional_encoding_forward.1} parent=15 // pred_check
          %p108 = pneg %p31
        $region18: #{positional_encoding_forward.1} parent=15 // pred_check_branch
          %110 = sbr.rel (%p108) target = $region20
        $region19: #{positional_encoding_forward.1} parent=15 // pred_region
          %s111 = smul.u32 8, %s11
          %p112 = scmp.lt.s32.totalorder %s111, 15
          %s113 = scalar_select %p112, %s111, 15
          %s114 = smul.addr %s113, 2
          %s115 = scalar_lea.vmem %s0, %s114
          %s116 = smul.u32 8, %s11
        $region20: #{positional_encoding_forward.1} parent=15 // pred_fallthru
          _
        // Predicated region
        $region21: #{positional_encoding_forward.1} parent=15 // pred_check
          %p117 = pneg %p57
        $region22: #{positional_encoding_forward.1} parent=15 // pred_check_branch
          %119 = sbr.rel (%p117) target = $region24
        $region23: #{positional_encoding_forward.1} parent=15 // pred_region
          %s120 = smul.u32 8, %s11
          %p121 = scmp.lt.s32.totalorder %s120, 63
          %s122 = scalar_select %p121, %s120, 63
          %s123 = scalar_lea.vmem %s1, %s122
          %s124 = smul.u32 8, %s11
        $region24: #{positional_encoding_forward.1} parent=15 // pred_fallthru
          _
      $region16: #{positional_encoding_forward.1} parent=5 // pred_fallthru
        _
      %p125 = scmp.le.s32.totalorder 1, %s11
      %p126 = scmp.lt.s32.totalorder %s11, 3
      %p127 = pnand %p125, %p126
      %p128 = pneg %p127
      // Predicated region
      $region25: #{positional_encoding_forward.1} parent=5 // pred_check
        _
      $region26: #{positional_encoding_forward.1} parent=5 // pred_check_branch
        %130 = sbr.rel (%p127) target = $region28
      $region27: #{positional_encoding_forward.1} parent=5 // pred_region
        %s131 = ssub.s32 %s11, 1
        %s132 = smul.u32 8, %s16
        %p133 = scmp.lt.s32.totalorder %s132, 15
        %s134 = scalar_select %p133, %s132, 15
        %s135 = smul.addr %s134, 2
        %s136 = scalar_lea.vmem %s0, %s135
        %p137 = pneg %p37
        %p138 = pneg %p34
        %s139 = smul.u32 8, %s16
        %p140 = scmp.lt.s32.totalorder %s139, 63
        %s141 = scalar_select %p140, %s139, 63
        %s142 = scalar_lea.vmem %s1, %s141
        %p143 = pneg %p63
        %p144 = pneg %p60
        %p145 = pneg %p89
        %p146 = pneg %p86
        %s147 = sand.u32 %s76, 1
        %s148 = scalar_lea.sflag [#allocation3], %s147
        %s149 = sand.u32 %s76, 1
        %s150 = smul.addr %s149, 16
        %s151 = scalar_lea.vmem [#allocation2], %s150
        %s152 = smul.u32 8, %s16
        %p153 = scmp.lt.s32.totalorder %s152, 15
        %s154 = scalar_select %p153, %s152, 15
        %s155 = smul.addr %s154, 2
        %s156 = scalar_lea.vmem %s0, %s155
        %s157 = smul.u32 8, %s16
        %s158 = smul.u32 8, %s16
        %p159 = scmp.lt.s32.totalorder %s158, 63
        %s160 = scalar_select %p159, %s158, 63
        %s161 = scalar_lea.vmem %s1, %s160
        %s162 = smul.u32 8, %s16
        %s163 = smul.u32 8, %s16
        %v164 = vld [vmem:[%s156] sm:$0x3]
        %v165 = vld [vmem:[%s156 + $0x2] sm:$0x3]
        %v166 = vld [vmem:[%s156 + $0x4] sm:$0x3]
        %v167 = vld [vmem:[%s156 + $0x6] sm:$0x3]
        %v168 = vld [vmem:[%s156 + $0x8] sm:$0x3]
        %v169 = vld [vmem:[%s156 + $0xa] sm:$0x3]
        %v170 = vld [vmem:[%s156 + $0xc] sm:$0x3]
        %v171 = vld [vmem:[%s156 + $0xe] sm:$0x3]
        %v172 = vld [vmem:[%s161] sm:$0x1]
        %v173 = vld [vmem:[%s161 + $0x1] sm:$0x1]
        %v174 = vld [vmem:[%s161 + $0x2] sm:$0x1]
        %v175 = vld [vmem:[%s161 + $0x3] sm:$0x1]
        %v176 = vld [vmem:[%s161 + $0x4] sm:$0x1]
        %v177 = vld [vmem:[%s161 + $0x5] sm:$0x1]
        %v178 = vld [vmem:[%s161 + $0x6] sm:$0x1]
        %v179 = vld [vmem:[%s161 + $0x7] sm:$0x1]
        %v188 = vlaneseq
        %v189 = vshrl.u32 %v188, 7
        %v190 = vsub.s32 0, %v189
        %v191 = vrot.slane %v172, %v190
        %v192 = vlaneseq
        %v193 = vshrl.u32 %v192, 7
        %v194 = vsub.s32 0, %v193
        %v195 = vrot.slane %v173, %v194
        %v196 = vlaneseq
        %v197 = vshrl.u32 %v196, 7
        %v198 = vsub.s32 0, %v197
        %v199 = vrot.slane %v174, %v198
        %v200 = vlaneseq
        %v201 = vshrl.u32 %v200, 7
        %v202 = vsub.s32 0, %v201
        %v203 = vrot.slane %v175, %v202
        %v204 = vlaneseq
        %v205 = vshrl.u32 %v204, 7
        %v206 = vsub.s32 0, %v205
        %v207 = vrot.slane %v176, %v206
        %v208 = vlaneseq
        %v209 = vshrl.u32 %v208, 7
        %v210 = vsub.s32 0, %v209
        %v211 = vrot.slane %v177, %v210
        %v212 = vlaneseq
        %v213 = vshrl.u32 %v212, 7
        %v214 = vsub.s32 0, %v213
        %v215 = vrot.slane %v178, %v214
        %v216 = vlaneseq
        %v217 = vshrl.u32 %v216, 7
        %v218 = vsub.s32 0, %v217
        %v219 = vrot.slane %v179, %v218
        %v228 = vadd.f32 %v164, %v191
        %v229 = vadd.f32 %v165, %v195
        %v230 = vadd.f32 %v166, %v199
        %v231 = vadd.f32 %v167, %v203
        %v232 = vadd.f32 %v168, %v207
        %v233 = vadd.f32 %v169, %v211
        %v234 = vadd.f32 %v170, %v215
        %v235 = vadd.f32 %v171, %v219
        %vm236 = vcmask 254976
        %237 = vst.msk [vmem:[%s151] sm:$0x3] %vm236, %v228
        %238 = vst.msk [vmem:[%s151 + $0x2] sm:$0x3] %vm236, %v229
        %239 = vst.msk [vmem:[%s151 + $0x4] sm:$0x3] %vm236, %v230
        %240 = vst.msk [vmem:[%s151 + $0x6] sm:$0x3] %vm236, %v231
        %241 = vst.msk [vmem:[%s151 + $0x8] sm:$0x3] %vm236, %v232
        %242 = vst.msk [vmem:[%s151 + $0xa] sm:$0x3] %vm236, %v233
        %243 = vst.msk [vmem:[%s151 + $0xc] sm:$0x3] %vm236, %v234
        %244 = vst.msk [vmem:[%s151 + $0xe] sm:$0x3] %vm236, %v235
        %s245 = sand.u32 %s76, 1
        %s246 = scalar_lea.sflag [#allocation3], %s245
        %s247 = sand.u32 %s76, 1
        %s248 = smul.addr %s247, 16
        %s249 = scalar_lea.vmem [#allocation2], %s248
        // Predicated region
        $region29: #{positional_encoding_forward.1} parent=27 // pred_check
          %p250 = pneg %p86
        $region30: #{positional_encoding_forward.1} parent=27 // pred_check_branch
          %252 = sbr.rel (%p250) target = $region32
        $region31: #{positional_encoding_forward.1} parent=27 // pred_region
          %s253 = smul.u32 8, %s16
          %s255 = ssub.s32 256, 256
          %256 = vsyncadd %s246, %s255
          %s257 = smul.addr %s253, 32
          %s258 = scalar_lea.hbm %s2, %s257
          %s259 = sshll.u32 %s249, 4
          %s260 = int_to_ptr.vmem [resolvable:$true] %s259
          %265 = dma.vmem_to_hbm [thread:$0]  %s260, 256, %s258, %s246, 32, 32, 2
        $region32: #{positional_encoding_forward.1} parent=27 // pred_fallthru
          _
      $region28: #{positional_encoding_forward.1} parent=5 // pred_fallthru
        _
      %p266 = scmp.le.s32.totalorder 2, %s11
      // Predicated region
      $region33: #{positional_encoding_forward.1} parent=5 // pred_check
        %p267 = pneg %p266
      $region34: #{positional_encoding_forward.1} parent=5 // pred_check_branch
        %269 = sbr.rel (%p267) target = $region36
      $region35: #{positional_encoding_forward.1} parent=5 // pred_region
        %s270 = ssub.s32 %s11, 2
        // Predicated region
        $region37: #{positional_encoding_forward.1} parent=35 // pred_check
          %p271 = pneg %p92
        $region38: #{positional_encoding_forward.1} parent=35 // pred_check_branch
          %273 = sbr.rel (%p271) target = $region40
        $region39: #{positional_encoding_forward.1} parent=35 // pred_region
          %s274 = sand.u32 %s77, 1
          %s275 = scalar_lea.sflag [#allocation3], %s274
          %s276 = sand.u32 %s77, 1
          %s277 = smul.addr %s276, 16
          %s278 = scalar_lea.vmem [#allocation2], %s277
          %279 = dma.done %s275, 256
        $region40: #{positional_encoding_forward.1} parent=35 // pred_fallthru
          _
      $region36: #{positional_encoding_forward.1} parent=5 // pred_fallthru
        _
    $region6: #{positional_encoding_forward.1} parent=1 // loop_footer
      %s15 = sadd.s32 1, %s11
    $region7: #{positional_encoding_forward.1} parent=1 // loop_footer_branch
      %10 = sbr.rel target = $region3
    $region8: #{positional_encoding_forward.1} parent=1 // loop_exit
      _
    %280 = vsyncpa [#allocation3], 1
    %s281 = scalar_lea.sflag [#allocation3], 1
    %282 = vsyncpa %s281, 1

</llo_original>
